<compile_context>
chip_gen: v7x
topology: tpu7x:2x2x1
jax: 0.10.0
libtpu: 0.0.40
codegen_flags: <defaults>
</compile_context>

<pallas_src>
import functools

import jax
import jax.numpy as jnp
from jax.experimental import pallas as pl
from jax.experimental.pallas import tpu as pltpu


_MIN_GRID_STEPS = 8  # enough steps for prefetch/writeback overlap + megacore


def _layernorm2d_kernel(x_ref, w_ref, b_ref, o_ref, *, eps, c, groups):
    """One (groups*C, TILE_L) tile: channels (per group) on sublanes, spatial on lanes."""
    w = w_ref[...].astype(jnp.float32)          # (C, 1) — broadcasts over lanes
    b = b_ref[...].astype(jnp.float32)          # (C, 1)
    inv_c = 1.0 / c

    def _norm(xg):                              # xg: (C, TILE_L) float32
        mean = jnp.sum(xg, axis=0, keepdims=True) * inv_c
        xc = xg - mean                          # two-pass: avoids E[x^2]-E[x]^2 cancellation
        var = jnp.sum(xc * xc, axis=0, keepdims=True) * inv_c
        return xc * jax.lax.rsqrt(var + eps) * w + b

    if groups == 1:
        o_ref[...] = _norm(x_ref[...].astype(jnp.float32)).astype(o_ref.dtype)
    else:
        # Static (small) unrolled loop over packed images within the block.
        for g in range(groups):
            rows = pl.ds(g * c, c)
            xg = x_ref[rows, :].astype(jnp.float32)
            o_ref[rows, :] = _norm(xg).astype(o_ref.dtype)


def _pick_groups(batch, c, itemsize):
    """Pack G batch images into one block when C leaves sublanes half-empty."""
    pack = max(32 // max(itemsize, 1), 1)       # 8 rows/vreg fp32, 16 bf16, 32 int8
    if c >= pack or batch <= 1:
        return 1
    g_max = min(pack // c, 8)                   # cap unrolled in-kernel loop
    for g in range(g_max, 1, -1):
        if batch % g == 0:
            return g
    return 1


def _pick_tile_l(c_eff, length, itemsize, target_block_bytes, batch_steps):
    """Lane-tile size: multiple of 128 (or full L) under the byte budget, preferring
    (a) enough total grid steps and (b) a divisor of L (unmasked lane-dense stores)."""
    if length <= 128:
        return length                           # full-extent last dim is always legal
    per_lane = max(c_eff * itemsize, 1)
    budget_lanes = max(int(target_block_bytes) // per_lane, 128)
    # Split L so batch_steps * num_l >= _MIN_GRID_STEPS when possible.
    want_l_steps = max(-(-_MIN_GRID_STEPS // max(batch_steps, 1)), 1)
    steps_cap = max(((length // want_l_steps) // 128) * 128, 128)
    max_lanes = max((min(budget_lanes, steps_cap) // 128) * 128, 128)
    if length <= max_lanes:
        return length
    # Prefer the largest multiple of 128 that divides L -> no masked last block.
    t = max_lanes
    while t >= 128:
        if length % t == 0:
            return t
        t -= 128
    return max_lanes                            # fallback: masked (benign) last block


def _vmem_capacity_bytes():
    try:
        info = pltpu.get_tpu_info()
        cap = getattr(info, "vmem_capacity_bytes", None)
        if cap:
            return int(cap)
    except Exception:
        pass
    return 64 * 1024 * 1024                     # conservative: v7x physical per-TC


def layernorm2d(x_nchw, weight, bias, *, eps=1e-6, target_block_bytes=4 << 20):
    """LayerNorm over the channel dim of an NCHW tensor (== LayerNorm2d.forward).

    NOTE: eps defaults to 1e-6 to match the module spec (torch.nn.LayerNorm default
    is 1e-5; pass eps explicitly if you need that).
    """
    B, C, H, W = x_nchw.shape
    L = H * W
    itemsize = jnp.dtype(x_nchw.dtype).itemsize

    groups = _pick_groups(B, C, itemsize)
    b_g = B // groups
    c_eff = groups * C

    # Contiguous views only — no data movement.
    x_rows = x_nchw.reshape(b_g, c_eff, L)

    tile_l = _pick_tile_l(c_eff, L, itemsize, target_block_bytes, b_g)
    num_l = pl.cdiv(L, tile_l)

    w2d = weight.reshape(C, 1)
    b2d = bias.reshape(C, 1)

    # VMEM budget derived from the chosen block, clamped per generation.
    block_bytes = c_eff * tile_l * itemsize
    vmem_needed = 6 * block_bytes + (4 << 20)   # dbl-buffered in+out + f32 temps + slack
    vmem_limit = max(min(vmem_needed, (_vmem_capacity_bytes() * 3) // 4), 16 << 20)

    n_elems = B * C * L
    cost = pl.CostEstimate(
        flops=8 * n_elems,
        transcendentals=B * L,
        bytes_accessed=2 * n_elems * itemsize
        + 2 * C * jnp.dtype(weight.dtype).itemsize,
    )

    kernel = functools.partial(_layernorm2d_kernel, eps=eps, c=C, groups=groups)

    out = pl.pallas_call(
        kernel,
        out_shape=jax.ShapeDtypeStruct((b_g, c_eff, L), x_rows.dtype),
        grid_spec=pltpu.PrefetchScalarGridSpec(
            num_scalar_prefetch=0,
            grid=(b_g, num_l),
            in_specs=[
                pl.BlockSpec((None, c_eff, tile_l), lambda b, l: (b, 0, l)),
                pl.BlockSpec((C, 1), lambda b, l: (0, 0)),
                pl.BlockSpec((C, 1), lambda b, l: (0, 0)),
            ],
            out_specs=pl.BlockSpec((None, c_eff, tile_l), lambda b, l: (b, 0, l)),
        ),
        compiler_params=pltpu.CompilerParams(
            dimension_semantics=("parallel", "parallel"),
            vmem_limit_bytes=int(vmem_limit),
        ),
        cost_estimate=cost,
    )(x_rows, w2d, b2d)

    return out.reshape(B, C, H, W)


def _reference(x_nchw, weight, bias, eps=1e-6):
    x = jnp.transpose(x_nchw, (0, 2, 3, 1)).astype(jnp.float32)
    mean = jnp.mean(x, axis=-1, keepdims=True)
    var = jnp.mean((x - mean) ** 2, axis=-1, keepdims=True)
    y = (x - mean) / jnp.sqrt(var + eps) * weight + bias
    return jnp.transpose(y, (0, 3, 1, 2)).astype(x_nchw.dtype)


if __name__ == "__main__":
    key = jax.random.PRNGKey(0)
    kx, kw, kb, kx2 = jax.random.split(key, 4)

    B, C, H, W = 2, 4, 16, 16                   # normalized_shape = C = 4
    x = jax.random.normal(kx, (B, C, H, W), dtype=jnp.float32)
    weight = 1.0 + 0.1 * jax.random.normal(kw, (C,), dtype=jnp.float32)
    bias = 0.1 * jax.random.normal(kb, (C,), dtype=jnp.float32)

    # Exercises the small-C sublane-packing path (G=2, dense (8, 128) blocks).
    out = jax.block_until_ready(layernorm2d(x, weight, bias, eps=1e-6))
    ref = _reference(x, weight, bias, eps=1e-6)
    assert out.shape == (B, C, H, W)
    assert jnp.allclose(out, ref, atol=1e-5, rtol=1e-5), "mismatch vs reference"

    # Exercises the unpacked (G=1) path plus a masked partial last lane block
    # (L=320, tile_l=128) — no jnp.pad anywhere.
    x2 = jax.random.normal(kx2, (1, C, 16, 20), dtype=jnp.float32)
    out2 = jax.block_until_ready(layernorm2d(x2, weight, bias, eps=1e-6))
    ref2 = _reference(x2, weight, bias, eps=1e-6)
    assert jnp.allclose(out2, ref2, atol=1e-5, rtol=1e-5), "mismatch vs reference (partial tile)"

    print("KERNEL_OK")
</pallas_src>

<mosaic_0001>
module attributes {stable_mosaic.version = 11 : i64} {
  func.func @_layernorm2d_kernel(%arg0: i32, %arg1: i32, %arg2: memref<1x8x128xf32, #tpu.memory_space<vmem>>, %arg3: memref<4x1xf32, #tpu.memory_space<vmem>>, %arg4: memref<4x1xf32, #tpu.memory_space<vmem>>, %arg5: memref<1x8x128xf32, #tpu.memory_space<vmem>>) attributes {dimension_semantics = [#tpu.dimension_semantics<parallel>, #tpu.dimension_semantics<parallel>], iteration_bounds = array<i64: 1, 2>, scalar_prefetch = 0 : i64, scratch_operands = 0 : i64, tpu.core_type = #tpu.core_type<tc>, window_params = [{transform_indices = @transform_0, window_bounds = array<i64: 1, 8, 128>}, {pipeline_mode = #tpu.pipeline_mode<synchronous>, transform_indices = @transform_1, window_bounds = array<i64: 4, 1>}, {pipeline_mode = #tpu.pipeline_mode<synchronous>, transform_indices = @transform_2, window_bounds = array<i64: 4, 1>}, {transform_indices = @transform_3, window_bounds = array<i64: 1, 8, 128>}]} {
    %c0 = arith.constant 0 : index
    %c0_0 = arith.constant 0 : index
    %0 = vector.load %arg3[%c0, %c0_0] : memref<4x1xf32, #tpu.memory_space<vmem>>, vector<4x1xf32>
    %c0_1 = arith.constant 0 : index
    %c0_2 = arith.constant 0 : index
    %1 = vector.load %arg4[%c0_1, %c0_2] : memref<4x1xf32, #tpu.memory_space<vmem>>, vector<4x1xf32>
    %c0_3 = arith.constant 0 : index
    %c0_4 = arith.constant 0 : index
    %c0_5 = arith.constant 0 : index
    %2 = vector.load %arg2[%c0_3, %c0_4, %c0_5] : memref<1x8x128xf32, #tpu.memory_space<vmem>>, vector<1x4x128xf32>
    %3 = vector.shape_cast %2 : vector<1x4x128xf32> to vector<4x128xf32>
    %cst = arith.constant dense<0.000000e+00> : vector<128xf32>
    %4 = vector.multi_reduction <add>, %3, %cst [0] : vector<4x128xf32> to vector<128xf32>
    %5 = vector.shape_cast %4 : vector<128xf32> to vector<1x128xf32>
    %cst_6 = arith.constant 2.500000e-01 : f32
    %6 = vector.broadcast %cst_6 : f32 to vector<1x128xf32>
    %7 = arith.mulf %5, %6 : vector<1x128xf32>
    %8 = vector.broadcast %7 : vector<1x128xf32> to vector<4x128xf32>
    %9 = arith.subf %3, %8 : vector<4x128xf32>
    %10 = arith.mulf %9, %9 : vector<4x128xf32>
    %cst_7 = arith.constant dense<0.000000e+00> : vector<128xf32>
    %11 = vector.multi_reduction <add>, %10, %cst_7 [0] : vector<4x128xf32> to vector<128xf32>
    %12 = vector.shape_cast %11 : vector<128xf32> to vector<1x128xf32>
    %cst_8 = arith.constant 2.500000e-01 : f32
    %13 = vector.broadcast %cst_8 : f32 to vector<1x128xf32>
    %14 = arith.mulf %12, %13 : vector<1x128xf32>
    %cst_9 = arith.constant 9.99999997E-7 : f32
    %15 = vector.broadcast %cst_9 : f32 to vector<1x128xf32>
    %16 = arith.addf %14, %15 : vector<1x128xf32>
    %17 = math.rsqrt %16 : vector<1x128xf32>
    %18 = vector.broadcast %17 : vector<1x128xf32> to vector<4x128xf32>
    %19 = arith.mulf %9, %18 : vector<4x128xf32>
    %20 = vector.broadcast %0 : vector<4x1xf32> to vector<4x128xf32>
    %21 = arith.mulf %19, %20 : vector<4x128xf32>
    %22 = vector.broadcast %1 : vector<4x1xf32> to vector<4x128xf32>
    %23 = arith.addf %21, %22 : vector<4x128xf32>
    %c0_10 = arith.constant 0 : index
    %c0_11 = arith.constant 0 : index
    %c0_12 = arith.constant 0 : index
    %24 = vector.load %arg5[%c0_10, %c0_11, %c0_12] : memref<1x8x128xf32, #tpu.memory_space<vmem>>, vector<1x4x128xf32>
    %25 = vector.shape_cast %24 : vector<1x4x128xf32> to vector<4x128xf32>
    %26 = vector.shape_cast %23 : vector<4x128xf32> to vector<1x4x128xf32>
    tpu.vector_store %arg5[%c0_10, %c0_11, %c0_12], %26 {strides = array<i32>} : memref<1x8x128xf32, #tpu.memory_space<vmem>>, vector<1x4x128xf32>,
    %c0_13 = arith.constant 0 : index
    %c4 = arith.constant 4 : index
    %c0_14 = arith.constant 0 : index
    %27 = vector.load %arg2[%c0_13, %c4, %c0_14] : memref<1x8x128xf32, #tpu.memory_space<vmem>>, vector<1x4x128xf32>
    %28 = vector.shape_cast %27 : vector<1x4x128xf32> to vector<4x128xf32>
    %cst_15 = arith.constant dense<0.000000e+00> : vector<128xf32>
    %29 = vector.multi_reduction <add>, %28, %cst_15 [0] : vector<4x128xf32> to vector<128xf32>
    %30 = vector.shape_cast %29 : vector<128xf32> to vector<1x128xf32>
    %cst_16 = arith.constant 2.500000e-01 : f32
    %31 = vector.broadcast %cst_16 : f32 to vector<1x128xf32>
    %32 = arith.mulf %30, %31 : vector<1x128xf32>
    %33 = vector.broadcast %32 : vector<1x128xf32> to vector<4x128xf32>
    %34 = arith.subf %28, %33 : vector<4x128xf32>
    %35 = arith.mulf %34, %34 : vector<4x128xf32>
    %cst_17 = arith.constant dense<0.000000e+00> : vector<128xf32>
    %36 = vector.multi_reduction <add>, %35, %cst_17 [0] : vector<4x128xf32> to vector<128xf32>
    %37 = vector.shape_cast %36 : vector<128xf32> to vector<1x128xf32>
    %cst_18 = arith.constant 2.500000e-01 : f32
    %38 = vector.broadcast %cst_18 : f32 to vector<1x128xf32>
    %39 = arith.mulf %37, %38 : vector<1x128xf32>
    %cst_19 = arith.constant 9.99999997E-7 : f32
    %40 = vector.broadcast %cst_19 : f32 to vector<1x128xf32>
    %41 = arith.addf %39, %40 : vector<1x128xf32>
    %42 = math.rsqrt %41 : vector<1x128xf32>
    %43 = vector.broadcast %42 : vector<1x128xf32> to vector<4x128xf32>
    %44 = arith.mulf %34, %43 : vector<4x128xf32>
    %45 = vector.broadcast %0 : vector<4x1xf32> to vector<4x128xf32>
    %46 = arith.mulf %44, %45 : vector<4x128xf32>
    %47 = vector.broadcast %1 : vector<4x1xf32> to vector<4x128xf32>
    %48 = arith.addf %46, %47 : vector<4x128xf32>
    %c0_20 = arith.constant 0 : index
    %c4_21 = arith.constant 4 : index
    %c0_22 = arith.constant 0 : index
    %49 = vector.load %arg5[%c0_20, %c4_21, %c0_22] : memref<1x8x128xf32, #tpu.memory_space<vmem>>, vector<1x4x128xf32>
    %50 = vector.shape_cast %49 : vector<1x4x128xf32> to vector<4x128xf32>
    %51 = vector.shape_cast %48 : vector<4x128xf32> to vector<1x4x128xf32>
    tpu.vector_store %arg5[%c0_20, %c4_21, %c0_22], %51 {strides = array<i32>} : memref<1x8x128xf32, #tpu.memory_space<vmem>>, vector<1x4x128xf32>,
    return
  }
  func.func @transform_0(%arg0: i32, %arg1: i32) -> (i32, i32, i32) {
    %c0_i32 = arith.constant 0 : i32
    %c0_i32_0 = arith.constant 0 : i32
    return %arg0, %c0_i32, %arg1 : i32, i32, i32
  }
  func.func @transform_1(%arg0: i32, %arg1: i32) -> (i32, i32) {
    %c0_i32 = arith.constant 0 : i32
    %c0_i32_0 = arith.constant 0 : i32
    %c0_i32_1 = arith.constant 0 : i32
    return %c0_i32, %c0_i32_0 : i32, i32
  }
  func.func @transform_2(%arg0: i32, %arg1: i32) -> (i32, i32) {
    %c0_i32 = arith.constant 0 : i32
    %c0_i32_0 = arith.constant 0 : i32
    %c0_i32_1 = arith.constant 0 : i32
    return %c0_i32, %c0_i32_0 : i32, i32
  }
  func.func @transform_3(%arg0: i32, %arg1: i32) -> (i32, i32, i32) {
    %c0_i32 = arith.constant 0 : i32
    %c0_i32_0 = arith.constant 0 : i32
    return %arg0, %c0_i32, %arg1 : i32, i32, i32
  }
}

</mosaic_0001>

<llo_original>
// kernel: tpu_custom_call.1
$region0: #{tpu_custom_call.1}
  #allocation0 [shape = 'u32[]', space=smem, size = 0x4, offset = 0x4, fixed_abs, tag = 'smem constant byte address 0x4 - core index']
  #allocation1 [shape = 'u32[144,128]{1,0:T(1,128)}', space=vmem, size = 0x12000, scoped, tag = 'internal scratch']
  %s0 = inlined_call_operand.hbm [shape: f32[1,8,256], index: 0, kind: input, shape index: {}]
  %s1 = inlined_call_operand.vmem [shape: f32[4,1], index: 1, kind: input, shape index: {}]
  %s2 = inlined_call_operand.vmem [shape: f32[4,1], index: 2, kind: input, shape index: {}]
  %s3 = inlined_call_operand.hbm [shape: f32[1,8,256], index: 3, kind: output, shape index: {}]
  %s4 = sld [smem:[#allocation0]]
  $region49: #{tpu_custom_call.1} parent=0
    _
  %s6 = ssub.s32 1, %s4
  %s7 = scalar_select 0, %s6, %s4
  $region1: #{tpu_custom_call.1} parent=0
    #allocation2 [shape = 'u8[8192]{0}', space=vmem, size = 0x2000, scoped, tag = 'input window, operand 0']
    #allocation3 [shape = 's32[2]{0}', space=sflag, size = 0x8, scoped, tag = 'scoped memory for tpu_custom_call.1']
    #allocation4 [shape = 's32[2]{0}', space=sflag, size = 0x8, scoped, tag = 'scoped memory for tpu_custom_call.1']
    #allocation5 [shape = 'u8[8192]{0}', space=vmem, size = 0x2000, scoped, tag = 'output window, operand 0']
    %8 = vsyncpa [#allocation3], 0
    %s9 = scalar_lea.sflag [#allocation3], 1
    %10 = vsyncpa %s9, 0
    %11 = vsyncpa [#allocation4], 0
    %s12 = scalar_lea.sflag [#allocation4], 1
    %13 = vsyncpa %s12, 0
    loop: start=0, step=1, limit=4
    $region2: #{tpu_custom_call.1} parent=1 // loop_pre_header
      _
    $region3: #{tpu_custom_call.1} parent=1 // loop_header
      %s15 = sphi 0, %s19
      %p16 = scmp.ge.s32.totalorder %s15, 4
      %s22 = sphi 0, %s34
      %s23 = sphi 0, %s30
      %s24 = sphi 0, %s22
      %s25 = sphi 0, %s23
      %s26 = sphi 0, %s24
      %s27 = sphi 0, %s25
      %s39 = sphi 0, %s41
      %s42 = sphi 0, %s39
      %s43 = sphi 0, %s42
      %s59 = sphi 0, %s43
      %s63 = sphi 0, %s63
      %s65 = sphi 0, %s63
      %s66 = sphi 0, %s65
      %s80 = sphi 0, %s66
      %s84 = sphi 0, %s84
      %s86 = sphi 0, %s84
      %s87 = sphi 0, %s86
      %s101 = sphi 0, %s87
      %s109 = sphi 0, %s111
      %s112 = sphi 0, %s109
      %s113 = sphi 0, %s112
      %s129 = sphi 0, %s113
    $region4: #{tpu_custom_call.1} parent=1 // loop_header_branch
      %18 = sbr.rel (%p16) target = $region8
    $region5: #{tpu_custom_call.1} parent=1 // loop_body
      %s20 = ssub.s32 %s15, 1
      %s21 = ssub.s32 %s15, 2
      %s28 = sadd.s32 1, %s23
      %p29 = scmp.ge.s32.totalorder %s28, 2
      %s30 = scalar_select %p29, 0, %s28
      %s31 = sadd.s32 1, %s22
      %s32 = scalar_select %p29, %s31, %s22
      %p33 = scmp.ge.s32.totalorder %s32, 1
      %s34 = scalar_select %p33, 0, %s32
      %s35 = ssub.s32 %s22, %s34
      %s36 = ssub.s32 %s23, %s30
      %s37 = sor.u32 %s35, %s36
      %p38 = scmp.eq.s32.totalorder %s37, 0
      %s40 = sadd.s32 %s39, 1
      %s41 = scalar_select %p38, %s39, %s40
      %p44 = pneg %p38
      %p45 = scmp.eq.s32.totalorder %s15, 1
      %p46 = por %p44, %p45
      %p47 = scmp.ne.s32.totalorder %s39, %s42
      %p48 = scmp.eq.s32.totalorder %s15, 0
      %p49 = por %p47, %p48
      %p50 = scmp.ne.s32.totalorder %s39, %s42
      %p51 = scmp.eq.s32.totalorder %s20, 1
      %p52 = por %p50, %p51
      %p53 = scmp.ne.s32.totalorder %s42, %s43
      %p54 = scmp.eq.s32.totalorder %s20, 0
      %p55 = por %p53, %p54
      %p56 = scmp.ne.s32.totalorder %s42, %s43
      %p57 = scmp.eq.s32.totalorder %s21, 1
      %p58 = por %p56, %p57
      %p60 = scmp.ne.s32.totalorder %s43, %s59
      %p61 = scmp.eq.s32.totalorder %s21, 0
      %p62 = por %p60, %p61
      %s64 = sadd.s32 %s63, 1
      %p67 = scmp.eq.s32.totalorder %s15, 1
      %p68 = scmp.ne.s32.totalorder %s63, %s65
      %p69 = scmp.eq.s32.totalorder %s15, 0
      %p70 = por %p68, %p69
      %p71 = scmp.ne.s32.totalorder %s63, %s65
      %p72 = scmp.eq.s32.totalorder %s20, 1
      %p73 = por %p71, %p72
      %p74 = scmp.ne.s32.totalorder %s65, %s66
      %p75 = scmp.eq.s32.totalorder %s20, 0
      %p76 = por %p74, %p75
      %p77 = scmp.ne.s32.totalorder %s65, %s66
      %p78 = scmp.eq.s32.totalorder %s21, 1
      %p79 = por %p77, %p78
      %p81 = scmp.ne.s32.totalorder %s66, %s80
      %p82 = scmp.eq.s32.totalorder %s21, 0
      %p83 = por %p81, %p82
      %s85 = sadd.s32 %s84, 1
      %p88 = scmp.eq.s32.totalorder %s15, 1
      %p89 = scmp.ne.s32.totalorder %s84, %s86
      %p90 = scmp.eq.s32.totalorder %s15, 0
      %p91 = por %p89, %p90
      %p92 = scmp.ne.s32.totalorder %s84, %s86
      %p93 = scmp.eq.s32.totalorder %s20, 1
      %p94 = por %p92, %p93
      %p95 = scmp.ne.s32.totalorder %s86, %s87
      %p96 = scmp.eq.s32.totalorder %s20, 0
      %p97 = por %p95, %p96
      %p98 = scmp.ne.s32.totalorder %s86, %s87
      %p99 = scmp.eq.s32.totalorder %s21, 1
      %p100 = por %p98, %p99
      %p102 = scmp.ne.s32.totalorder %s87, %s101
      %p103 = scmp.eq.s32.totalorder %s21, 0
      %p104 = por %p102, %p103
      %s105 = ssub.s32 %s22, %s34
      %s106 = ssub.s32 %s23, %s30
      %s107 = sor.u32 %s105, %s106
      %p108 = scmp.eq.s32.totalorder %s107, 0
      %s110 = sadd.s32 %s109, 1
      %s111 = scalar_select %p108, %s109, %s110
      %p114 = pneg %p108
      %p115 = scmp.eq.s32.totalorder %s15, 1
      %p116 = por %p114, %p115
      %p117 = scmp.ne.s32.totalorder %s109, %s112
      %p118 = scmp.eq.s32.totalorder %s15, 0
      %p119 = por %p117, %p118
      %p120 = scmp.ne.s32.totalorder %s109, %s112
      %p121 = scmp.eq.s32.totalorder %s20, 1
      %p122 = por %p120, %p121
      %p123 = scmp.ne.s32.totalorder %s112, %s113
      %p124 = scmp.eq.s32.totalorder %s20, 0
      %p125 = por %p123, %p124
      %p126 = scmp.ne.s32.totalorder %s112, %s113
      %p127 = scmp.eq.s32.totalorder %s21, 1
      %p128 = por %p126, %p127
      %p130 = scmp.ne.s32.totalorder %s113, %s129
      %p131 = scmp.eq.s32.totalorder %s21, 0
      %p132 = por %p130, %p131
      %p133 = scmp.le.s32.totalorder 1, %s15
      %p134 = scmp.lt.s32.totalorder %s15, 3
      %p135 = pnand %p133, %p134
      %p136 = pneg %p135
      // Predicated region
      $region9: #{tpu_custom_call.1} parent=5 // pred_check
        _
      $region10: #{tpu_custom_call.1} parent=5 // pred_check_branch
        %138 = sbr.rel (%p135) target = $region12
      $region11: #{tpu_custom_call.1} parent=5 // pred_region
        %s139 = ssub.s32 %s15, 1
        // Predicated region
        $region13: #{tpu_custom_call.1} parent=11 // pred_check
          %p140 = pneg %p76
        $region14: #{tpu_custom_call.1} parent=11 // pred_check_branch
          %142 = sbr.rel (%p140) target = $region16
        $region15: #{tpu_custom_call.1} parent=11 // pred_region
          _
        $region16: #{tpu_custom_call.1} parent=11 // pred_fallthru
          _
        // Predicated region
        $region17: #{tpu_custom_call.1} parent=11 // pred_check
          %p143 = pneg %p97
        $region18: #{tpu_custom_call.1} parent=11 // pred_check_branch
          %145 = sbr.rel (%p143) target = $region20
        $region19: #{tpu_custom_call.1} parent=11 // pred_region
          _
        $region20: #{tpu_custom_call.1} parent=11 // pred_fallthru
          _
      $region12: #{tpu_custom_call.1} parent=5 // pred_fallthru
        _
      %p146 = scmp.lt.s32.totalorder %s15, 2
      // Predicated region
      $region21: #{tpu_custom_call.1} parent=5 // pred_check
        %p147 = pneg %p146
      $region22: #{tpu_custom_call.1} parent=5 // pred_check_branch
        %149 = sbr.rel (%p147) target = $region24
      $region23: #{tpu_custom_call.1} parent=5 // pred_region
        // Predicated region
        $region25: #{tpu_custom_call.1} parent=23 // pred_check
          %p150 = pneg %p49
        $region26: #{tpu_custom_call.1} parent=23 // pred_check_branch
          %152 = sbr.rel (%p150) target = $region28
        $region27: #{tpu_custom_call.1} parent=23 // pred_region
          %s153 = sand.u32 %s39, 1
          %s154 = scalar_lea.sflag [#allocation3], %s153
          %s155 = sand.u32 %s39, 1
          %s156 = smul.addr %s155, 8
          %s157 = scalar_lea.vmem [#allocation2], %s156
          %s159 = ssub.s32 128, 128
          %160 = vsyncadd %s154, %s159
          %s161 = smul.addr %s22, 2
          %s162 = sadd.s32 %s23, %s161
          %s163 = smul.addr %s162, 128
          %s164 = scalar_lea.hbm %s0, %s163
          %s166 = sshll.u32 %s157, 4
          %s167 = int_to_ptr.vmem [resolvable:$true] %s166
          %169 = dma.hbm_to_vmem [thread:$0]  %s164, 128, %s167, %s154
        $region28: #{tpu_custom_call.1} parent=23 // pred_fallthru
          _
      $region24: #{tpu_custom_call.1} parent=5 // pred_fallthru
        _
      %p170 = scmp.le.s32.totalorder 1, %s15
      %p171 = scmp.lt.s32.totalorder %s15, 3
      %p172 = pnand %p170, %p171
      %p173 = pneg %p172
      // Predicated region
      $region29: #{tpu_custom_call.1} parent=5 // pred_check
        _
      $region30: #{tpu_custom_call.1} parent=5 // pred_check_branch
        %175 = sbr.rel (%p172) target = $region32
      $region31: #{tpu_custom_call.1} parent=5 // pred_region
        %s176 = ssub.s32 %s15, 1
        %s177 = sand.u32 %s42, 1
        %s178 = scalar_lea.sflag [#allocation3], %s177
        %s179 = sand.u32 %s42, 1
        %s180 = smul.addr %s179, 8
        %s181 = scalar_lea.vmem [#allocation2], %s180
        // Predicated region
        $region33: #{tpu_custom_call.1} parent=31 // pred_check
          %p182 = pneg %p55
        $region34: #{tpu_custom_call.1} parent=31 // pred_check_branch
          %184 = sbr.rel (%p182) target = $region36
        $region35: #{tpu_custom_call.1} parent=31 // pred_region
          %185 = dma.done %s178, 128
        $region36: #{tpu_custom_call.1} parent=31 // pred_fallthru
          _
        %s186 = sand.u32 %s42, 1
        %s187 = scalar_lea.sflag [#allocation3], %s186
        %s188 = sand.u32 %s42, 1
        %s189 = smul.addr %s188, 8
        %s190 = scalar_lea.vmem [#allocation2], %s189
        %p191 = pneg %p55
        %p192 = pneg %p52
        %p193 = pneg %p76
        %p194 = pneg %p73
        %p195 = pneg %p97
        %p196 = pneg %p94
        %p197 = pneg %p125
        %p198 = pneg %p122
        %s199 = sand.u32 %s112, 1
        %s200 = scalar_lea.sflag [#allocation4], %s199
        %s201 = sand.u32 %s112, 1
        %s202 = smul.addr %s201, 8
        %s203 = scalar_lea.vmem [#allocation5], %s202
        %v204 = vld [vmem:[%s1] sm:$0xf]
        %v205 = vld [vmem:[%s2] sm:$0xf]
        %v206 = vld [vmem:[%s181] sm:$0xf]
        %vm207 = vcmask 1043456
        %v208 = vsel %vm207, %v206, 0.0
        %v209 = vrot.slane %v208, 4
        %v210 = vadd.f32 %v208, %v209
        %v211 = vrot.slane %v210, 2
        %v212 = vadd.f32 %v210, %v211
        %v213 = vrot.slane %v212, 1
        %v214 = vadd.f32 %v212, %v213
        %v215 = vmul.f32 %v214, 0.25
        %v216 = vsub.f32 %v206, %v215
        %v217 = vmul.f32 %v216, %v216
        %v218 = vsel %vm207, %v217, 0.0
        %v219 = vrot.slane %v218, 4
        %v220 = vadd.f32 %v218, %v219
        %v221 = vrot.slane %v220, 2
        %v222 = vadd.f32 %v220, %v221
        %v223 = vrot.slane %v222, 1
        %v224 = vadd.f32 %v222, %v223
        %v225 = vmul.f32 %v224, 0.25
        %v226 = vadd.f32 %v225, 1e-06
        %v227 = vrsqrt.pop %v226
        %v228 = vmul.f32 %v216, %v227
        %230 = vset.pattern.permute.xlu0 0
        %231 = vperm.xlu0 %230, %v204
        %v232 = vpop.permute.xlu0 %231
        %v234 = vmul.f32 %v228, %v232
        %236 = vset.pattern.permute.xlu0 0
        %237 = vperm.xlu0 %236, %v205
        %v238 = vpop.permute.xlu0 %237
        %v240 = vadd.f32 %v234, %v238
        %241 = vst [vmem:[%s203] sm:$0xf] %v240
        %v242 = vld [vmem:[%s181 + $0x4] sm:$0xf]
        %v243 = vsel %vm207, %v242, 0.0
        %v244 = vrot.slane %v243, 4
        %v245 = vadd.f32 %v243, %v244
        %v246 = vrot.slane %v245, 2
        %v247 = vadd.f32 %v245, %v246
        %v248 = vrot.slane %v247, 1
        %v249 = vadd.f32 %v247, %v248
        %v250 = vmul.f32 %v249, 0.25
        %v251 = vsub.f32 %v242, %v250
        %v252 = vmul.f32 %v251, %v251
        %v253 = vsel %vm207, %v252, 0.0
        %v254 = vrot.slane %v253, 4
        %v255 = vadd.f32 %v253, %v254
        %v256 = vrot.slane %v255, 2
        %v257 = vadd.f32 %v255, %v256
        %v258 = vrot.slane %v257, 1
        %v259 = vadd.f32 %v257, %v258
        %v260 = vmul.f32 %v259, 0.25
        %v261 = vadd.f32 %v260, 1e-06
        %v262 = vrsqrt.pop %v261
        %v263 = vmul.f32 %v251, %v262
        %v264 = vmul.f32 %v263, %v232
        %v265 = vadd.f32 %v264, %v238
        %266 = vst [vmem:[%s203 + $0x4] sm:$0xf] %v265
        %s267 = sand.u32 %s112, 1
        %s268 = scalar_lea.sflag [#allocation4], %s267
        %s269 = sand.u32 %s112, 1
        %s270 = smul.addr %s269, 8
        %s271 = scalar_lea.vmem [#allocation5], %s270
        // Predicated region
        $region37: #{tpu_custom_call.1} parent=31 // pred_check
          %p272 = pneg %p122
        $region38: #{tpu_custom_call.1} parent=31 // pred_check_branch
          %274 = sbr.rel (%p272) target = $region40
        $region39: #{tpu_custom_call.1} parent=31 // pred_region
          %s276 = ssub.s32 128, 128
          %277 = vsyncadd %s268, %s276
          %s278 = smul.addr %s24, 2
          %s279 = sadd.s32 %s25, %s278
          %s280 = smul.addr %s279, 128
          %s281 = scalar_lea.hbm %s3, %s280
          %s283 = sshll.u32 %s271, 4
          %s284 = int_to_ptr.vmem [resolvable:$true] %s283
          %286 = dma.vmem_to_hbm [thread:$0]  %s284, 128, %s281, %s268
        $region40: #{tpu_custom_call.1} parent=31 // pred_fallthru
          _
      $region32: #{tpu_custom_call.1} parent=5 // pred_fallthru
        _
      %p287 = scmp.le.s32.totalorder 2, %s15
      // Predicated region
      $region41: #{tpu_custom_call.1} parent=5 // pred_check
        %p288 = pneg %p287
      $region42: #{tpu_custom_call.1} parent=5 // pred_check_branch
        %290 = sbr.rel (%p288) target = $region44
      $region43: #{tpu_custom_call.1} parent=5 // pred_region
        %s291 = ssub.s32 %s15, 2
        // Predicated region
        $region45: #{tpu_custom_call.1} parent=43 // pred_check
          %p292 = pneg %p128
        $region46: #{tpu_custom_call.1} parent=43 // pred_check_branch
          %294 = sbr.rel (%p292) target = $region48
        $region47: #{tpu_custom_call.1} parent=43 // pred_region
          %s295 = sand.u32 %s113, 1
          %s296 = scalar_lea.sflag [#allocation4], %s295
          %s297 = sand.u32 %s113, 1
          %s298 = smul.addr %s297, 8
          %s299 = scalar_lea.vmem [#allocation5], %s298
          %300 = dma.done %s296, 128
        $region48: #{tpu_custom_call.1} parent=43 // pred_fallthru
          _
      $region44: #{tpu_custom_call.1} parent=5 // pred_fallthru
        _
    $region6: #{tpu_custom_call.1} parent=1 // loop_footer
      %s19 = sadd.s32 1, %s15
    $region7: #{tpu_custom_call.1} parent=1 // loop_footer_branch
      %14 = sbr.rel target = $region3
    $region8: #{tpu_custom_call.1} parent=1 // loop_exit
      _
    %301 = vsyncpa [#allocation3], 1
    %s302 = scalar_lea.sflag [#allocation3], 1
    %303 = vsyncpa %s302, 1
    %304 = vsyncpa [#allocation4], 1
    %s305 = scalar_lea.sflag [#allocation4], 1
    %306 = vsyncpa %s305, 1

</llo_original>
